<compile_context>
chip_gen: v6e
topology: v6e:2x2x1
jax: 0.10.0
libtpu: 0.0.40
codegen_flags: <defaults>
</compile_context>

<pallas_src>
import jax
import jax.numpy as jnp
from jax.experimental import pallas as pl
from jax.experimental.pallas import tpu as pltpu

LANE = 128
NEG_BIG = -1e30  # "minus infinity" bias for padded class lanes (finite => no NaNs)


def _round_up(x, m):
    return ((x + m - 1) // m) * m


# --------------------------------------------------------------------------- #
# Kernels
# --------------------------------------------------------------------------- #
def gcn_layer1_kernel(a_ref, x_ref, w1_ref, b1_ref, m1_ref, h1_ref):
    """One row block of H1 = dropout(relu(A_hat @ (X @ W1) + b1))."""
    # (TM, Np) @ (Np, Fp) -> f32 accumulate
    t = jnp.dot(a_ref[...], x_ref[...], preferred_element_type=jnp.float32)
    h = jnp.dot(t.astype(jnp.bfloat16), w1_ref[...],
                preferred_element_type=jnp.float32)
    h = jnp.maximum(h + b1_ref[...], 0.0)
    h = h * m1_ref[...]                       # pre-scaled dropout mask (0 or 1/(1-p))
    h1_ref[...] = h.astype(jnp.bfloat16)


def gcn_layer2_head_kernel(a_ref, h1_ref, w2_ref, b2_ref, m2_ref,
                           wm_ref, bm_ref, out_ref):
    """Row block of log_softmax(dropout(relu(A_hat @ H1 @ W2 + b2)) @ W_mlp + b_mlp)."""
    t = jnp.dot(a_ref[...], h1_ref[...], preferred_element_type=jnp.float32)
    h = jnp.dot(t.astype(jnp.bfloat16), w2_ref[...],
                preferred_element_type=jnp.float32)
    h = jnp.maximum(h + b2_ref[...], 0.0)
    h = h * m2_ref[...]
    # fused mpl1 -> mpl2 -> mpl3 (single GEMM); padded class lanes get bias -1e30
    z = jnp.dot(h.astype(jnp.bfloat16), wm_ref[...],
                preferred_element_type=jnp.float32) + bm_ref[...]
    m = jnp.max(z, axis=1, keepdims=True)
    lse = m + jnp.log(jnp.sum(jnp.exp(z - m), axis=1, keepdims=True))
    out_ref[...] = z - lse


# --------------------------------------------------------------------------- #
# JAX glue
# --------------------------------------------------------------------------- #
def build_norm_adj(edge_index, n):
    """Dense D^{-1/2} (A + I) D^{-1/2} from a (2, E) edge_index (PyG GCNConv norm)."""
    src = edge_index[0]
    dst = edge_index[1]
    loops = jnp.arange(n, dtype=edge_index.dtype)
    src = jnp.concatenate([src, loops])
    dst = jnp.concatenate([dst, loops])
    a = jnp.zeros((n, n), jnp.float32).at[dst, src].add(1.0)
    deg = jnp.sum(a, axis=1)
    dinv = jnp.where(deg > 0, jax.lax.rsqrt(deg), 0.0)
    return dinv[:, None] * a * dinv[None, :]


def _pad_to(x, shape, fill=0.0):
    out = jnp.full(shape, fill, jnp.float32)
    return out.at[tuple(slice(0, s) for s in x.shape)].set(x.astype(jnp.float32))


def gcn2lin2mlp3_forward(x, edge_index, params, *, n_classes, dropout_masks,
                         row_tile=256):
    n, f = x.shape
    hidden = params["w1"].shape[1]

    a_hat = build_norm_adj(edge_index, n)

    # Algebraic fusion of the activation-free MLP head (exactly equivalent math).
    w_mlp = params["w3"] @ params["w4"] @ params["w5"]
    b_mlp = (params["b3"] @ params["w4"] @ params["w5"]
             + params["b4"] @ params["w5"]
             + params["b5"])

    # Lane padding to 128 for dense vector loads / unmasked stores.
    fp = _round_up(f, LANE)
    hp = _round_up(hidden, LANE)
    cp = _round_up(n_classes, LANE)

    # Row tiling of the streamed A_hat operand. 256-row bf16 blocks are safe for
    # v7x's 64 MiB VMEM (double-buffered A block + resident H + weights); larger
    # tiles are fine on v5e/v6e (128 MiB).
    tm = row_tile if n > row_tile else _round_up(n, 16)
    np_ = _round_up(n, tm)
    grid = (np_ // tm,)

    a_p = _pad_to(a_hat, (np_, np_)).astype(jnp.bfloat16)
    x_p = _pad_to(x, (np_, fp)).astype(jnp.bfloat16)
    w1_p = _pad_to(params["w1"], (fp, hp)).astype(jnp.bfloat16)
    b1_p = _pad_to(params["b1"], (1, hp))
    w2_p = _pad_to(params["w2"], (hp, hp)).astype(jnp.bfloat16)
    b2_p = _pad_to(params["b2"], (1, hp))
    wm_p = _pad_to(w_mlp, (hp, cp)).astype(jnp.bfloat16)
    bm_p = _pad_to(b_mlp, (1, cp), fill=NEG_BIG)     # mask padded classes in log_softmax
    m1_p = _pad_to(dropout_masks[0], (np_, hp))      # zeroes out padded rows/cols too
    m2_p = _pad_to(dropout_masks[1], (np_, hp))

    def row_blk(c):
        return pl.BlockSpec((tm, c), lambda i: (i, 0))

    def pinned(r, c):
        return pl.BlockSpec((r, c), lambda i: (0, 0))

    cparams = pltpu.CompilerParams(
        dimension_semantics=("parallel",),           # shard row tiles across TCs (v7x)
        vmem_limit_bytes=48 * 1024 * 1024,
    )

    # Phase 1: H1 = dropout(relu(A_hat @ X @ W1 + b1)), stored bf16 (halves residency).
    h1 = pl.pallas_call(
        gcn_layer1_kernel,
        out_shape=jax.ShapeDtypeStruct((np_, hp), jnp.bfloat16),
        grid=grid,
        in_specs=[
            pl.BlockSpec((tm, np_), lambda i: (i, 0)),   # A_hat row block (streamed)
            pinned(np_, fp),                             # X resident
            pinned(fp, hp),                              # W1 pinned
            pinned(1, hp),                               # b1 pinned
            row_blk(hp),                                 # dropout mask 1
        ],
        out_specs=row_blk(hp),
        compiler_params=cparams,
    )(a_p, x_p, w1_p, b1_p, m1_p)

    # Phase 2: GCN layer 2 + fused MLP head + log_softmax.
    out_p = pl.pallas_call(
        gcn_layer2_head_kernel,
        out_shape=jax.ShapeDtypeStruct((np_, cp), jnp.float32),
        grid=grid,
        in_specs=[
            pl.BlockSpec((tm, np_), lambda i: (i, 0)),   # A_hat row block (streamed)
            pinned(np_, hp),                             # H1 resident
            pinned(hp, hp),                              # W2 pinned
            pinned(1, hp),                               # b2 pinned
            row_blk(hp),                                 # dropout mask 2
            pinned(hp, cp),                              # fused MLP weight
            pinned(1, cp),                               # fused MLP bias (+ -1e30 pad)
        ],
        out_specs=row_blk(cp),
        compiler_params=cparams,
    )(a_p, h1, w2_p, b2_p, m2_p, wm_p, bm_p)

    return out_p[:n, :n_classes]


def _init_linear(key, fan_in, fan_out):
    k1, k2 = jax.random.split(key)
    bound = 1.0 / (fan_in ** 0.5)
    w = jax.random.uniform(k1, (fan_in, fan_out), jnp.float32, -bound, bound)
    b = jax.random.uniform(k2, (1, fan_out), jnp.float32, -bound, bound)
    return w, b


if __name__ == "__main__":
    # Small deterministic problem: N=16 nodes, features_dim=8, hidden_dim=32, n_classes=4.
    features_dim, hidden_dim, n_classes = 8, 32, 4
    dropout_p = 0.5
    n_nodes, n_edges = 16, 24

    key = jax.random.PRNGKey(0)
    kx, ke, k1, k2, k3, k4, k5, kd1, kd2 = jax.random.split(key, 9)

    x = jax.random.normal(kx, (n_nodes, features_dim), jnp.float32)
    pairs = jax.random.randint(ke, (2, n_edges), 0, n_nodes, jnp.int32)
    edge_index = jnp.concatenate(
        [pairs, jnp.stack([pairs[1], pairs[0]])], axis=1)   # (2, 48) undirected

    w1, b1 = _init_linear(k1, features_dim, hidden_dim)     # conv1 weight/bias
    w2, b2 = _init_linear(k2, hidden_dim, hidden_dim)       # conv2 weight/bias
    w3, b3 = _init_linear(k3, hidden_dim, hidden_dim)       # mpl1
    w4, b4 = _init_linear(k4, hidden_dim, hidden_dim)       # mpl2
    w5, b5 = _init_linear(k5, hidden_dim, n_classes)        # mpl3
    params = dict(w1=w1, b1=b1, w2=w2, b2=b2, w3=w3, b3=b3,
                  w4=w4, b4=b4, w5=w5, b5=b5)
    # TODO(synk): lin1/lin2 from __init__ are unused in forward and not materialized.

    # Dropout masks (F.dropout, training=True): zero with prob p, keep scaled by 1/(1-p).
    keep = 1.0 - dropout_p
    m1 = jax.random.bernoulli(kd1, keep, (n_nodes, hidden_dim)).astype(jnp.float32) / keep
    m2 = jax.random.bernoulli(kd2, keep, (n_nodes, hidden_dim)).astype(jnp.float32) / keep

    out = gcn2lin2mlp3_forward(x, edge_index, params,
                               n_classes=n_classes, dropout_masks=(m1, m2))
    out = jax.block_until_ready(out)
    assert out.shape == (n_nodes, n_classes)
    assert bool(jnp.all(jnp.isfinite(out)))

    # Pure-f32 reference with identical dropout masks (tolerance covers bf16 matmuls).
    a_hat = build_norm_adj(edge_index, n_nodes)
    h = jnp.maximum(a_hat @ (x @ w1) + b1, 0.0) * m1
    h = jnp.maximum(a_hat @ (h @ w2) + b2, 0.0) * m2
    h = ((h @ w3 + b3) @ w4 + b4) @ w5 + b5
    ref = jax.nn.log_softmax(h, axis=1)
    max_err = float(jnp.max(jnp.abs(out - ref)))
    assert max_err < 0.25, f"mismatch vs reference, max abs err = {max_err}"

    print("KERNEL_OK")
</pallas_src>

<mosaic_0001>
module attributes {stable_mosaic.version = 11 : i64} {
  func.func @gcn_layer1_kernel(%arg0: i32, %arg1: memref<16x16xbf16, #tpu.memory_space<vmem>>, %arg2: memref<16x128xbf16, #tpu.memory_space<vmem>>, %arg3: memref<128x128xbf16, #tpu.memory_space<vmem>>, %arg4: memref<1x128xf32, #tpu.memory_space<vmem>>, %arg5: memref<16x128xf32, #tpu.memory_space<vmem>>, %arg6: memref<16x128xbf16, #tpu.memory_space<vmem>>) attributes {dimension_semantics = [#tpu.dimension_semantics<parallel>], iteration_bounds = array<i64: 1>, scalar_prefetch = 0 : i64, scratch_operands = 0 : i64, tpu.core_type = #tpu.core_type<tc>, window_params = [{transform_indices = @transform_0, window_bounds = array<i64: 16, 16>}, {pipeline_mode = #tpu.pipeline_mode<synchronous>, transform_indices = @transform_1, window_bounds = array<i64: 16, 128>}, {pipeline_mode = #tpu.pipeline_mode<synchronous>, transform_indices = @transform_2, window_bounds = array<i64: 128, 128>}, {pipeline_mode = #tpu.pipeline_mode<synchronous>, transform_indices = @transform_3, window_bounds = array<i64: 1, 128>}, {transform_indices = @transform_4, window_bounds = array<i64: 16, 128>}, {transform_indices = @transform_5, window_bounds = array<i64: 16, 128>}]} {
    %c0 = arith.constant 0 : index
    %c0_0 = arith.constant 0 : index
    %0 = vector.load %arg1[%c0, %c0_0] : memref<16x16xbf16, #tpu.memory_space<vmem>>, vector<16x16xbf16>
    %c0_1 = arith.constant 0 : index
    %c0_2 = arith.constant 0 : index
    %1 = vector.load %arg2[%c0_1, %c0_2] : memref<16x128xbf16, #tpu.memory_space<vmem>>, vector<16x128xbf16>
    %cst = arith.constant dense<0.000000e+00> : vector<16x128xf32>
    %2 = tpu.matmul %0, %1, %cst {dimension_numbers = #tpu.dot_dimension_numbers<[1], [0], [0], [1], [0, 0, 1, 1], [], []>} : vector<16x16xbf16>, vector<16x128xbf16>, vector<16x128xf32> -> vector<16x128xf32>
    %3 = arith.truncf %2 : vector<16x128xf32> to vector<16x128xbf16>
    %c0_3 = arith.constant 0 : index
    %c0_4 = arith.constant 0 : index
    %4 = vector.load %arg3[%c0_3, %c0_4] : memref<128x128xbf16, #tpu.memory_space<vmem>>, vector<128x128xbf16>
    %cst_5 = arith.constant dense<0.000000e+00> : vector<16x128xf32>
    %5 = tpu.matmul %3, %4, %cst_5 {dimension_numbers = #tpu.dot_dimension_numbers<[1], [0], [0], [1], [0, 0, 1, 1], [], []>} : vector<16x128xbf16>, vector<128x128xbf16>, vector<16x128xf32> -> vector<16x128xf32>
    %c0_6 = arith.constant 0 : index
    %c0_7 = arith.constant 0 : index
    %6 = vector.load %arg4[%c0_6, %c0_7] : memref<1x128xf32, #tpu.memory_space<vmem>>, vector<1x128xf32>
    %7 = vector.broadcast %6 : vector<1x128xf32> to vector<16x128xf32>
    %8 = arith.addf %5, %7 : vector<16x128xf32>
    %cst_8 = arith.constant 0.000000e+00 : f32
    %9 = vector.broadcast %cst_8 : f32 to vector<16x128xf32>
    %10 = arith.maximumf %8, %9 : vector<16x128xf32>
    %c0_9 = arith.constant 0 : index
    %c0_10 = arith.constant 0 : index
    %11 = vector.load %arg5[%c0_9, %c0_10] : memref<16x128xf32, #tpu.memory_space<vmem>>, vector<16x128xf32>
    %12 = arith.mulf %10, %11 : vector<16x128xf32>
    %13 = arith.truncf %12 : vector<16x128xf32> to vector<16x128xbf16>
    %c0_11 = arith.constant 0 : index
    %c0_12 = arith.constant 0 : index
    %14 = vector.load %arg6[%c0_11, %c0_12] : memref<16x128xbf16, #tpu.memory_space<vmem>>, vector<16x128xbf16>
    tpu.vector_store %arg6[%c0_11, %c0_12], %13 {strides = array<i32>} : memref<16x128xbf16, #tpu.memory_space<vmem>>, vector<16x128xbf16>,
    return
  }
  func.func @transform_0(%arg0: i32) -> (i32, i32) {
    %c0_i32 = arith.constant 0 : i32
    %c0_i32_0 = arith.constant 0 : i32
    return %arg0, %c0_i32 : i32, i32
  }
  func.func @transform_1(%arg0: i32) -> (i32, i32) {
    %c0_i32 = arith.constant 0 : i32
    %c0_i32_0 = arith.constant 0 : i32
    %c0_i32_1 = arith.constant 0 : i32
    return %c0_i32, %c0_i32_0 : i32, i32
  }
  func.func @transform_2(%arg0: i32) -> (i32, i32) {
    %c0_i32 = arith.constant 0 : i32
    %c0_i32_0 = arith.constant 0 : i32
    %c0_i32_1 = arith.constant 0 : i32
    return %c0_i32, %c0_i32_0 : i32, i32
  }
  func.func @transform_3(%arg0: i32) -> (i32, i32) {
    %c0_i32 = arith.constant 0 : i32
    %c0_i32_0 = arith.constant 0 : i32
    %c0_i32_1 = arith.constant 0 : i32
    return %c0_i32, %c0_i32_0 : i32, i32
  }
  func.func @transform_4(%arg0: i32) -> (i32, i32) {
    %c0_i32 = arith.constant 0 : i32
    %c0_i32_0 = arith.constant 0 : i32
    return %arg0, %c0_i32 : i32, i32
  }
  func.func @transform_5(%arg0: i32) -> (i32, i32) {
    %c0_i32 = arith.constant 0 : i32
    %c0_i32_0 = arith.constant 0 : i32
    return %arg0, %c0_i32 : i32, i32
  }
}

</mosaic_0001>

<llo_original>
// kernel: tpu_custom_call.1
$region0: #{tpu_custom_call.1}
  #allocation0 [shape = 'u32[]', space=smem, size = 0x4, offset = 0x4, fixed_abs, tag = 'smem constant byte address 0x4 - core index']
  #allocation1 [shape = 'u32[144,128]{1,0:T(1,128)}', space=vmem, size = 0x12000, scoped, tag = 'internal scratch']
  %s0 = inlined_call_operand.hbm [shape: bf16[16,16], index: 0, kind: input, shape index: {}]
  %s1 = inlined_call_operand.hbm [shape: bf16[16,128], index: 1, kind: input, shape index: {}]
  %s2 = inlined_call_operand.hbm [shape: bf16[128,128], index: 2, kind: input, shape index: {}]
  %s3 = inlined_call_operand.vmem [shape: f32[1,128], index: 3, kind: input, shape index: {}]
  %s4 = inlined_call_operand.hbm [shape: f32[16,128], index: 4, kind: input, shape index: {}]
  %s5 = inlined_call_operand.hbm [shape: bf16[16,128], index: 5, kind: output, shape index: {}]
  %s6 = sld [smem:[#allocation0]]
  $region46: #{tpu_custom_call.1} parent=0
    _
  %s8 = ssub.s32 1, %s6
  %s9 = scalar_select 0, %s8, %s6
  $region1: #{tpu_custom_call.1} parent=0
    #allocation2 [shape = 'u8[4096]{0}', space=vmem, size = 0x1000, scoped, tag = 'input window, operand 0, single buffered']
    #allocation3 [shape = 's32[1]{0}', space=sflag, size = 0x4, scoped, tag = 'scoped memory for tpu_custom_call.1']
    #allocation4 [shape = 's32[1]{0}', space=sflag, size = 0x4, scoped, tag = 'scoped memory for tpu_custom_call.1']
    #allocation5 [shape = 'u8[4096]{0}', space=vmem, size = 0x1000, scoped, tag = 'input window, operand 1, single buffered']
    #allocation6 [shape = 's32[1]{0}', space=sflag, size = 0x4, scoped, tag = 'scoped memory for tpu_custom_call.1']
    #allocation7 [shape = 'u8[32768]{0}', space=vmem, size = 0x8000, scoped, tag = 'input window, operand 2, single buffered']
    #allocation8 [shape = 'u8[8192]{0}', space=vmem, size = 0x2000, scoped, tag = 'input window, operand 4, single buffered']
    #allocation9 [shape = 's32[1]{0}', space=sflag, size = 0x4, scoped, tag = 'scoped memory for tpu_custom_call.1']
    #allocation10 [shape = 'u8[4096]{0}', space=vmem, size = 0x1000, scoped, tag = 'output window, operand 0, single buffered']
    %10 = vsyncpa [#allocation3], 0
    %11 = vsyncpa [#allocation6], 0
    %12 = vsyncpa [#allocation9], 0
    %13 = vsyncpa [#allocation4], 0
    // Predicated region
    $region2: #{tpu_custom_call.1} parent=1 // pred_check
      _
    $region3: #{tpu_custom_call.1} parent=1 // pred_check_branch
      %15 = sbr.rel (0) target = $region5
    $region4: #{tpu_custom_call.1} parent=1 // pred_region
      %s17 = ssub.s32 128, 128
      %18 = vsyncadd [#allocation3], %s17
      %s19 = sshll.u32 [#allocation2], 4
      %s20 = int_to_ptr.vmem [resolvable:$true] %s19
      %25 = dma.hbm_to_vmem [thread:$0]  %s0, 128, %s20, [#allocation3], 64, 64, 4
    $region5: #{tpu_custom_call.1} parent=1 // pred_fallthru
      _
    // Predicated region
    $region6: #{tpu_custom_call.1} parent=1 // pred_check
      _
    $region7: #{tpu_custom_call.1} parent=1 // pred_check_branch
      %27 = sbr.rel (0) target = $region9
    $region8: #{tpu_custom_call.1} parent=1 // pred_region
      %s29 = ssub.s32 128, 128
      %30 = vsyncadd [#allocation6], %s29
      %s31 = sshll.u32 [#allocation5], 4
      %s32 = int_to_ptr.vmem [resolvable:$true] %s31
      %37 = dma.hbm_to_vmem [thread:$0]  %s1, 128, %s32, [#allocation6], 64, 64, 4
    $region9: #{tpu_custom_call.1} parent=1 // pred_fallthru
      _
    // Predicated region
    $region10: #{tpu_custom_call.1} parent=1 // pred_check
      _
    $region11: #{tpu_custom_call.1} parent=1 // pred_check_branch
      %39 = sbr.rel (0) target = $region13
    $region12: #{tpu_custom_call.1} parent=1 // pred_region
      %s41 = ssub.s32 1024, 1024
      %42 = vsyncadd [#allocation6], %s41
      %s43 = sshll.u32 [#allocation7], 4
      %s44 = int_to_ptr.vmem [resolvable:$true] %s43
      %49 = dma.hbm_to_vmem [thread:$0]  %s2, 1024, %s44, [#allocation6], 64, 64, 4
    $region13: #{tpu_custom_call.1} parent=1 // pred_fallthru
      _
    // Predicated region
    $region14: #{tpu_custom_call.1} parent=1 // pred_check
      _
    $region15: #{tpu_custom_call.1} parent=1 // pred_check_branch
      %51 = sbr.rel (0) target = $region17
    $region16: #{tpu_custom_call.1} parent=1 // pred_region
      _
    $region17: #{tpu_custom_call.1} parent=1 // pred_fallthru
      _
    // Predicated region
    $region18: #{tpu_custom_call.1} parent=1 // pred_check
      _
    $region19: #{tpu_custom_call.1} parent=1 // pred_check_branch
      %53 = sbr.rel (0) target = $region21
    $region20: #{tpu_custom_call.1} parent=1 // pred_region
      %s55 = ssub.s32 256, 256
      %56 = vsyncadd [#allocation9], %s55
      %s57 = sshll.u32 [#allocation8], 4
      %s58 = int_to_ptr.vmem [resolvable:$true] %s57
      %63 = dma.hbm_to_vmem [thread:$0]  %s4, 256, %s58, [#allocation9], 128, 128, 8
    $region21: #{tpu_custom_call.1} parent=1 // pred_fallthru
      _
    // Predicated region
    $region22: #{tpu_custom_call.1} parent=1 // pred_check
      _
    $region23: #{tpu_custom_call.1} parent=1 // pred_check_branch
      %65 = sbr.rel (0) target = $region25
    $region24: #{tpu_custom_call.1} parent=1 // pred_region
      %66 = dma.done [#allocation3], 128
    $region25: #{tpu_custom_call.1} parent=1 // pred_fallthru
      _
    // Predicated region
    $region26: #{tpu_custom_call.1} parent=1 // pred_check
      _
    $region27: #{tpu_custom_call.1} parent=1 // pred_check_branch
      %68 = sbr.rel (0) target = $region29
    $region28: #{tpu_custom_call.1} parent=1 // pred_region
      %69 = dma.done [#allocation6], 128
    $region29: #{tpu_custom_call.1} parent=1 // pred_fallthru
      _
    // Predicated region
    $region30: #{tpu_custom_call.1} parent=1 // pred_check
      _
    $region31: #{tpu_custom_call.1} parent=1 // pred_check_branch
      %71 = sbr.rel (0) target = $region33
    $region32: #{tpu_custom_call.1} parent=1 // pred_region
      %72 = dma.done [#allocation6], 1024
    $region33: #{tpu_custom_call.1} parent=1 // pred_fallthru
      _
    // Predicated region
    $region34: #{tpu_custom_call.1} parent=1 // pred_check
      _
    $region35: #{tpu_custom_call.1} parent=1 // pred_check_branch
      %74 = sbr.rel (0) target = $region37
    $region36: #{tpu_custom_call.1} parent=1 // pred_region
      %75 = dma.done [#allocation9], 256
    $region37: #{tpu_custom_call.1} parent=1 // pred_fallthru
      _
    %v77 = vld [vmem:[#allocation2] sm:$0xf]
    %v78 = vld [vmem:[#allocation2 + $0x4] sm:$0xf]
    %v79 = vld [vmem:[#allocation5] sm:$0xf]
    %v80 = vld [vmem:[#allocation5 + $0x4] sm:$0xf]
    %v83 = vunpack.c.l.b16 %v77
    %v84 = vunpack.c.l.b16 %v78
    %v85 = vpack.c.b16 %v84, %v83
    %v88 = vunpack.c.l.b16 %v79
    %v89 = vunpack.c.l.b16 %v80
    %v90 = vpack.c.b16 %v89, %v88
    %vm92 = vcmask 130048
    %v94 = vsel %vm92, %v85, 0
    %96 = vmatprep.subr.bf16.mxu0 0
    %97 = vmatpush1.bf16.msra.mxu0 0
    %98 = vmatprep.subr.bf16.mxu0 0
    %99 = vmatpush1.bf16.msra.mxu0 0
    %100 = vmatprep.subr.bf16.mxu0 0
    %101 = vmatpush1.bf16.msra.mxu0 0
    %102 = vmatprep.subr.bf16.mxu0 0
    %103 = vmatpush1.bf16.msra.mxu0 0
    %104 = vmatprep.subr.bf16.mxu0 0
    %105 = vmatpush1.bf16.msra.mxu0 0
    %106 = vmatprep.subr.bf16.mxu0 0
    %107 = vmatpush1.bf16.msra.mxu0 0
    %108 = vmatprep.subr.bf16.mxu0 0
    %109 = vmatpush1.bf16.msra.mxu0 0
    %110 = vmatprep.subr.bf16.mxu0 0
    %111 = vmatpush1.bf16.msra.mxu0 %v90
    %112 = vmatprep.subr.bf16.mxu0 0
    %113 = vmatpush2.bf16.msra.mxu0 0
    %114 = vmatprep.subr.bf16.mxu0 0
    %115 = vmatpush2.bf16.msra.mxu0 0
    %116 = vmatprep.subr.bf16.mxu0 0
    %117 = vmatpush2.bf16.msra.mxu0 0
    %118 = vmatprep.subr.bf16.mxu0 0
    %119 = vmatpush2.bf16.msra.mxu0 0
    %120 = vmatprep.subr.bf16.mxu0 0
    %121 = vmatpush2.bf16.msra.mxu0 0
    %122 = vmatprep.subr.bf16.mxu0 0
    %123 = vmatpush2.bf16.msra.mxu0 0
    %124 = vmatprep.subr.bf16.mxu0 0
    %125 = vmatpush2.bf16.msra.mxu0 0
    %126 = vmatprep.subr.bf16.mxu0 0
    %127 = vmatpush2.bf16.msra.mxu0 0
    %128 = vmatprep.mubr.bf16.mxu0 0
    %129 = vmatmul.mubr.bf16.gmra.mxu0 %v94
    %v130 = vpop.f32.mrf.mxu0
    %v131 = vadd.f32 0.0, %v130
    %v132 = vpop.f32.mrf.mxu0
    %v133 = vpop.f32.mrf.mxu0
    %v134 = vadd.f32 0.0, %v133
    %v135 = vpop.f32.mrf.mxu0
    %136 = vdwg.mxu0
    %v137 = vpack.c.bf16 %v134, %v131
    %v138 = vld [vmem:[#allocation7] sm:$0xf]
    %v139 = vld [vmem:[#allocation7 + $0x4] sm:$0xf]
    %v140 = vld [vmem:[#allocation7 + $0x8] sm:$0xf]
    %v141 = vld [vmem:[#allocation7 + $0xc] sm:$0xf]
    %v142 = vld [vmem:[#allocation7 + $0x10] sm:$0xf]
    %v143 = vld [vmem:[#allocation7 + $0x14] sm:$0xf]
    %v144 = vld [vmem:[#allocation7 + $0x18] sm:$0xf]
    %v145 = vld [vmem:[#allocation7 + $0x1c] sm:$0xf]
    %v146 = vld [vmem:[#allocation7 + $0x20] sm:$0xf]
    %v147 = vld [vmem:[#allocation7 + $0x24] sm:$0xf]
    %v148 = vld [vmem:[#allocation7 + $0x28] sm:$0xf]
    %v149 = vld [vmem:[#allocation7 + $0x2c] sm:$0xf]
    %v150 = vld [vmem:[#allocation7 + $0x30] sm:$0xf]
    %v151 = vld [vmem:[#allocation7 + $0x34] sm:$0xf]
    %v152 = vld [vmem:[#allocation7 + $0x38] sm:$0xf]
    %v153 = vld [vmem:[#allocation7 + $0x3c] sm:$0xf]
    %v154 = vld [vmem:[%s3] sm:$0x1]
    %v156 = vlaneseq
    %v157 = vshrl.u32 %v156, 7
    %v158 = vsub.s32 0, %v157
    %v159 = vrot.slane %v154, %v158
    %v177 = vunpack.c.l.b16 %v138
    %v178 = vunpack.c.l.b16 %v139
    %v179 = vunpack.c.l.b16 %v140
    %v180 = vunpack.c.l.b16 %v141
    %v181 = vunpack.c.l.b16 %v142
    %v182 = vunpack.c.l.b16 %v143
    %v183 = vunpack.c.l.b16 %v144
    %v184 = vunpack.c.l.b16 %v145
    %v185 = vunpack.c.l.b16 %v146
    %v186 = vunpack.c.l.b16 %v147
    %v187 = vunpack.c.l.b16 %v148
    %v188 = vunpack.c.l.b16 %v149
    %v189 = vunpack.c.l.b16 %v150
    %v190 = vunpack.c.l.b16 %v151
    %v191 = vunpack.c.l.b16 %v152
    %v192 = vunpack.c.l.b16 %v153
    %v193 = vpack.c.b16 %v178, %v177
    %v194 = vpack.c.b16 %v180, %v179
    %v195 = vpack.c.b16 %v182, %v181
    %v196 = vpack.c.b16 %v184, %v183
    %v197 = vpack.c.b16 %v186, %v185
    %v198 = vpack.c.b16 %v188, %v187
    %v199 = vpack.c.b16 %v190, %v189
    %v200 = vpack.c.b16 %v192, %v191
    %209 = vmatprep.subr.bf16.mxu0 0
    %210 = vmatpush1.bf16.msra.mxu0 %v200
    %211 = vmatprep.subr.bf16.mxu0 0
    %212 = vmatpush1.bf16.msra.mxu0 %v199
    %213 = vmatprep.subr.bf16.mxu0 0
    %214 = vmatpush1.bf16.msra.mxu0 %v198
    %215 = vmatprep.subr.bf16.mxu0 0
    %216 = vmatpush1.bf16.msra.mxu0 %v197
    %217 = vmatprep.subr.bf16.mxu0 0
    %218 = vmatpush1.bf16.msra.mxu0 %v196
    %219 = vmatprep.subr.bf16.mxu0 0
    %220 = vmatpush1.bf16.msra.mxu0 %v195
    %221 = vmatprep.subr.bf16.mxu0 0
    %222 = vmatpush1.bf16.msra.mxu0 %v194
    %223 = vmatprep.subr.bf16.mxu0 0
    %224 = vmatpush1.bf16.msra.mxu0 %v193
    %225 = vmatprep.subr.bf16.mxu0 0
    %226 = vmatpush2.bf16.msra.mxu0 0
    %227 = vmatprep.subr.bf16.mxu0 0
    %228 = vmatpush2.bf16.msra.mxu0 0
    %229 = vmatprep.subr.bf16.mxu0 0
    %230 = vmatpush2.bf16.msra.mxu0 0
    %231 = vmatprep.subr.bf16.mxu0 0
    %232 = vmatpush2.bf16.msra.mxu0 0
    %233 = vmatprep.subr.bf16.mxu0 0
    %234 = vmatpush2.bf16.msra.mxu0 0
    %235 = vmatprep.subr.bf16.mxu0 0
    %236 = vmatpush2.bf16.msra.mxu0 0
    %237 = vmatprep.subr.bf16.mxu0 0
    %238 = vmatpush2.bf16.msra.mxu0 0
    %239 = vmatprep.subr.bf16.mxu0 0
    %240 = vmatpush2.bf16.msra.mxu0 0
    %241 = vmatprep.mubr.bf16.mxu0 0
    %242 = vmatmul.mubr.bf16.gmra.mxu0 %v137
    %v243 = vpop.f32.mrf.mxu0
    %v244 = vadd.f32 %v159, %v243
    %v245 = vpop.f32.mrf.mxu0
    %v246 = vpop.f32.mrf.mxu0
    %v247 = vadd.f32 %v159, %v246
    %v248 = vpop.f32.mrf.mxu0
    %249 = vdwg.mxu0
    %v250 = vmax.f32 %v244, 0.0
    %v251 = vmax.f32 %v247, 0.0
    %v252 = vld [vmem:[#allocation8] sm:$0xff]
    %v253 = vld [vmem:[#allocation8 + $0x8] sm:$0xff]
    %v254 = vmul.f32 %v250, %v252
    %v255 = vmul.f32 %v251, %v253
    %v256 = vpack.c.bf16 %v255, %v254
    %v258 = vunpack.c.l.b16 %v256
    %v259 = vunpack.c.h.b16 %v256
    %v260 = vpack.c.b16 %v258, %v258
    %v261 = vpack.c.b16 %v259, %v259
    %264 = vst [vmem:[#allocation10] sm:$0xf] %v260
    %265 = vst [vmem:[#allocation10 + $0x4] sm:$0xf] %v261
    // Predicated region
    $region38: #{tpu_custom_call.1} parent=1 // pred_check
      _
    $region39: #{tpu_custom_call.1} parent=1 // pred_check_branch
      %267 = sbr.rel (0) target = $region41
    $region40: #{tpu_custom_call.1} parent=1 // pred_region
      %s269 = ssub.s32 128, 128
      %270 = vsyncadd [#allocation4], %s269
      %s271 = sshll.u32 [#allocation10], 4
      %s272 = int_to_ptr.vmem [resolvable:$true] %s271
      %277 = dma.vmem_to_hbm [thread:$0]  %s272, 128, %s5, [#allocation4], 64, 64, 4
    $region41: #{tpu_custom_call.1} parent=1 // pred_fallthru
      _
    // Predicated region
    $region42: #{tpu_custom_call.1} parent=1 // pred_check
      _
    $region43: #{tpu_custom_call.1} parent=1 // pred_check_branch
      %279 = sbr.rel (0) target = $region45
    $region44: #{tpu_custom_call.1} parent=1 // pred_region
      %280 = dma.done [#allocation4], 128
    $region45: #{tpu_custom_call.1} parent=1 // pred_fallthru
      _
    %281 = vsyncpa [#allocation3], 1
    %282 = vsyncpa [#allocation6], 1
    %283 = vsyncpa [#allocation9], 1
    %284 = vsyncpa [#allocation4], 1

</llo_original>
